<compile_context>
chip_gen: v6e
topology: v6e:2x2x1
jax: 0.10.0
libtpu: 0.0.40
codegen_flags: <defaults>
</compile_context>

<pallas_src>
import jax
import jax.numpy as jnp
from jax.experimental import pallas as pl
from jax.experimental.pallas import tpu as pltpu


_MAX_BLOCK_BYTES = 2 << 20  # ~2 MiB per input block -> <=8 MiB resident with
                            # in+out double-buffering; safe on v5e/v6e/v7x.


def _relu_kernel(x_ref, o_ref):
    # Pure VPU element-wise max against a dtype-matched zero over the tile.
    zero = jnp.zeros((), x_ref.dtype)
    o_ref[...] = jnp.maximum(x_ref[...], zero)


def _pick_block_rows(rows, cols, itemsize):
    """Largest multiple-of-8 divisor of `rows` within the VMEM byte budget,
    preferring a choice that yields grid >= 2 (pipelining / 2-TC split)."""
    if rows < 16 or rows % 8 != 0:
        # Full-array-dim escape: single block covering all rows (grid = 1).
        return rows
    row_bytes = max(cols * itemsize, 1)
    max_br = max(8, (_MAX_BLOCK_BYTES // row_bytes) // 8 * 8)
    best_any = 0      # largest fitting divisor (may equal rows -> grid 1)
    best_multi = 0    # largest fitting divisor strictly below rows -> grid >= 2
    br = 8
    while br <= rows:
        if rows % br == 0 and br <= max_br:
            best_any = br
            if br < rows:
                best_multi = br
        br += 8
    if best_multi:
        return best_multi
    if best_any:
        return best_any
    # Nothing under budget divides rows cleanly; fall back to one block.
    # TODO(synk): for very large activations add a padded lane-dense path.
    return rows


def relu_pallas(x):
    """ReLU over an arbitrary-shape tensor via a pipelined Pallas TPU kernel."""
    orig_shape = x.shape
    dtype = x.dtype

    if x.ndim == 0:
        return jnp.maximum(x, jnp.zeros((), dtype))

    n = x.size
    itemsize = jnp.dtype(dtype).itemsize

    # Zero-copy 2-D view: collapse the two trailing (spatial) dims onto the
    # lane axis and everything else onto the row/sublane axis.
    if x.ndim >= 3:
        cols = orig_shape[-1] * orig_shape[-2]
    else:
        cols = orig_shape[-1]
    rows = n // cols
    x2d = x.reshape(rows, cols)

    block_rows = _pick_block_rows(rows, cols, itemsize)
    grid = rows // block_rows

    cost = pl.CostEstimate(
        flops=n,
        transcendentals=0,
        bytes_accessed=2 * n * itemsize,  # read + write
    )

    out2d = pl.pallas_call(
        _relu_kernel,
        out_shape=jax.ShapeDtypeStruct((rows, cols), dtype),
        grid=(grid,),
        in_specs=[pl.BlockSpec((block_rows, cols), lambda i: (i, 0))],
        out_specs=pl.BlockSpec((block_rows, cols), lambda i: (i, 0)),
        compiler_params=pltpu.CompilerParams(
            dimension_semantics=("parallel",)),
        cost_estimate=cost,
    )(x2d)

    return out2d.reshape(orig_shape)


if __name__ == "__main__":
    key = jax.random.PRNGKey(0)
    # Same shape the reference module is exercised with: [1, 1232, 14, 14]
    x270 = jax.random.normal(key, (1, 1232, 14, 14), dtype=jnp.float32)

    relu_jit = jax.jit(relu_pallas)
    x271 = relu_jit(x270)
    jax.block_until_ready(x271)

    # Correctness check against plain JAX reference.
    ref = jnp.maximum(x270, 0.0)
    assert x271.shape == x270.shape
    assert x271.dtype == x270.dtype
    assert bool(jnp.array_equal(x271, ref))

    print("KERNEL_OK")
</pallas_src>

<mosaic_0001>
module attributes {stable_mosaic.version = 11 : i64} {
  func.func @_relu_kernel(%arg0: i32, %arg1: memref<616x196xf32, #tpu.memory_space<vmem>>, %arg2: memref<616x196xf32, #tpu.memory_space<vmem>>) attributes {dimension_semantics = [#tpu.dimension_semantics<parallel>], iteration_bounds = array<i64: 2>, scalar_prefetch = 0 : i64, scratch_operands = 0 : i64, tpu.core_type = #tpu.core_type<tc>, window_params = [{transform_indices = @transform_0, window_bounds = array<i64: 616, 196>}, {transform_indices = @transform_1, window_bounds = array<i64: 616, 196>}]} {
    %c0 = arith.constant 0 : index
    %c0_0 = arith.constant 0 : index
    %0 = vector.load %arg1[%c0, %c0_0] : memref<616x196xf32, #tpu.memory_space<vmem>>, vector<616x196xf32>
    %cst = arith.constant 0.000000e+00 : f32
    %1 = vector.broadcast %cst : f32 to vector<616x196xf32>
    %2 = arith.maximumf %0, %1 : vector<616x196xf32>
    %c0_1 = arith.constant 0 : index
    %c0_2 = arith.constant 0 : index
    %3 = vector.load %arg2[%c0_1, %c0_2] : memref<616x196xf32, #tpu.memory_space<vmem>>, vector<616x196xf32>
    tpu.vector_store %arg2[%c0_1, %c0_2], %2 {strides = array<i32>} : memref<616x196xf32, #tpu.memory_space<vmem>>, vector<616x196xf32>,
    return
  }
  func.func @transform_0(%arg0: i32) -> (i32, i32) {
    %c0_i32 = arith.constant 0 : i32
    %c0_i32_0 = arith.constant 0 : i32
    return %arg0, %c0_i32 : i32, i32
  }
  func.func @transform_1(%arg0: i32) -> (i32, i32) {
    %c0_i32 = arith.constant 0 : i32
    %c0_i32_0 = arith.constant 0 : i32
    return %arg0, %c0_i32 : i32, i32
  }
}

</mosaic_0001>

<llo_original>
// kernel: relu_pallas.1
$region0: #{relu_pallas.1}
  #allocation0 [shape = 'u32[]', space=smem, size = 0x4, offset = 0x4, fixed_abs, tag = 'smem constant byte address 0x4 - core index']
  #allocation1 [shape = 'u32[144,128]{1,0:T(1,128)}', space=vmem, size = 0x12000, scoped, tag = 'internal scratch']
  %s0 = inlined_call_operand.vmem [shape: f32[1232,196], index: 0, kind: input, shape index: {}]
  %s1 = inlined_call_operand.vmem [shape: f32[1232,196], index: 1, kind: output, shape index: {}]
  %s2 = sld [smem:[#allocation0]]
  $region37: #{relu_pallas.1} parent=0
    _
  %s4 = ssub.s32 1, %s2
  %s5 = scalar_select 0, %s4, %s2
  loop: start=0, step=1, limit=4
  $region2: #{relu_pallas.1} parent=0 // loop_pre_header
    _
  $region3: #{relu_pallas.1} parent=0 // loop_header
    %s7 = sphi 0, %s11
    %p8 = scmp.ge.s32.totalorder %s7, 4
    %s17 = sphi 0, %s19
    %s20 = sphi 0, %s17
    %s21 = sphi 0, %s20
    %s37 = sphi 0, %s21
    %s43 = sphi 0, %s45
    %s46 = sphi 0, %s43
    %s47 = sphi 0, %s46
    %s63 = sphi 0, %s47
  $region4: #{relu_pallas.1} parent=0 // loop_header_branch
    %10 = sbr.rel (%p8) target = $region8
  $region5: #{relu_pallas.1} parent=0 // loop_body
    %s12 = ssub.s32 %s7, 1
    %s13 = ssub.s32 %s7, 2
    %s14 = sadd.s32 %s7, 1
    %s15 = ssub.s32 %s7, %s14
    %p16 = scmp.eq.s32.totalorder %s15, 0
    %s18 = sadd.s32 %s17, 1
    %s19 = scalar_select %p16, %s17, %s18
    %p22 = pneg %p16
    %p23 = scmp.eq.s32.totalorder %s7, 1
    %p24 = por %p22, %p23
    %p25 = scmp.ne.s32.totalorder %s17, %s20
    %p26 = scmp.eq.s32.totalorder %s7, 0
    %p27 = por %p25, %p26
    %p28 = scmp.ne.s32.totalorder %s17, %s20
    %p29 = scmp.eq.s32.totalorder %s12, 1
    %p30 = por %p28, %p29
    %p31 = scmp.ne.s32.totalorder %s20, %s21
    %p32 = scmp.eq.s32.totalorder %s12, 0
    %p33 = por %p31, %p32
    %p34 = scmp.ne.s32.totalorder %s20, %s21
    %p35 = scmp.eq.s32.totalorder %s13, 1
    %p36 = por %p34, %p35
    %p38 = scmp.ne.s32.totalorder %s21, %s37
    %p39 = scmp.eq.s32.totalorder %s13, 0
    %p40 = por %p38, %p39
    %s41 = ssub.s32 %s7, %s14
    %p42 = scmp.eq.s32.totalorder %s41, 0
    %s44 = sadd.s32 %s43, 1
    %s45 = scalar_select %p42, %s43, %s44
    %p48 = pneg %p42
    %p49 = scmp.eq.s32.totalorder %s7, 1
    %p50 = por %p48, %p49
    %p51 = scmp.ne.s32.totalorder %s43, %s46
    %p52 = scmp.eq.s32.totalorder %s7, 0
    %p53 = por %p51, %p52
    %p54 = scmp.ne.s32.totalorder %s43, %s46
    %p55 = scmp.eq.s32.totalorder %s12, 1
    %p56 = por %p54, %p55
    %p57 = scmp.ne.s32.totalorder %s46, %s47
    %p58 = scmp.eq.s32.totalorder %s12, 0
    %p59 = por %p57, %p58
    %p60 = scmp.ne.s32.totalorder %s46, %s47
    %p61 = scmp.eq.s32.totalorder %s13, 1
    %p62 = por %p60, %p61
    %p64 = scmp.ne.s32.totalorder %s47, %s63
    %p65 = scmp.eq.s32.totalorder %s13, 0
    %p66 = por %p64, %p65
    %p67 = scmp.le.s32.totalorder 1, %s7
    %p68 = scmp.lt.s32.totalorder %s7, 3
    %p69 = pnand %p67, %p68
    %p70 = pneg %p69
    // Predicated region
    $region9: #{relu_pallas.1} parent=5 // pred_check
      _
    $region10: #{relu_pallas.1} parent=5 // pred_check_branch
      %72 = sbr.rel (%p69) target = $region12
    $region11: #{relu_pallas.1} parent=5 // pred_region
      %s73 = ssub.s32 %s7, 1
    $region12: #{relu_pallas.1} parent=5 // pred_fallthru
      _
    %p74 = scmp.lt.s32.totalorder %s7, 2
    // Predicated region
    $region13: #{relu_pallas.1} parent=5 // pred_check
      %p75 = pneg %p74
    $region14: #{relu_pallas.1} parent=5 // pred_check_branch
      %77 = sbr.rel (%p75) target = $region16
    $region15: #{relu_pallas.1} parent=5 // pred_region
      // Predicated region
      $region17: #{relu_pallas.1} parent=15 // pred_check
        %p78 = pneg %p27
      $region18: #{relu_pallas.1} parent=15 // pred_check_branch
        %80 = sbr.rel (%p78) target = $region20
      $region19: #{relu_pallas.1} parent=15 // pred_region
        %s81 = smul.u32 77, %s7
        %p82 = scmp.lt.s32.totalorder %s81, 153
        %s83 = scalar_select %p82, %s81, 153
        %s84 = smul.addr %s83, 2
        %s85 = smul.addr %s84, 8
        %s86 = scalar_lea.vmem %s0, %s85
        %s87 = smul.u32 77, %s7
      $region20: #{relu_pallas.1} parent=15 // pred_fallthru
        _
    $region16: #{relu_pallas.1} parent=5 // pred_fallthru
      _
    %p88 = scmp.le.s32.totalorder 1, %s7
    %p89 = scmp.lt.s32.totalorder %s7, 3
    %p90 = pnand %p88, %p89
    %p91 = pneg %p90
    // Predicated region
    $region21: #{relu_pallas.1} parent=5 // pred_check
      _
    $region22: #{relu_pallas.1} parent=5 // pred_check_branch
      %93 = sbr.rel (%p90) target = $region24
    $region23: #{relu_pallas.1} parent=5 // pred_region
      %s94 = ssub.s32 %s7, 1
      %s95 = smul.u32 77, %s12
      %p96 = scmp.lt.s32.totalorder %s95, 153
      %s97 = scalar_select %p96, %s95, 153
      %s98 = smul.addr %s97, 2
      %s99 = smul.addr %s98, 8
      %s100 = scalar_lea.vmem %s0, %s99
      %p101 = pneg %p33
      %p102 = pneg %p30
      %p103 = pneg %p59
      %p104 = pneg %p56
      %s105 = smul.u32 77, %s12
      %p106 = scmp.lt.s32.totalorder %s105, 153
      %s107 = scalar_select %p106, %s105, 153
      %s108 = smul.addr %s107, 2
      %s109 = smul.addr %s108, 8
      %s110 = scalar_lea.vmem %s1, %s109
      %s111 = smul.u32 77, %s12
      %p112 = scmp.lt.s32.totalorder %s111, 153
      %s113 = scalar_select %p112, %s111, 153
      %s114 = smul.addr %s113, 2
      %s115 = smul.addr %s114, 8
      %s116 = scalar_lea.vmem %s0, %s115
      %s117 = smul.u32 77, %s12
      %s118 = smul.u32 77, %s12
      %p119 = scmp.lt.s32.totalorder %s118, 153
      %s120 = scalar_select %p119, %s118, 153
      %s121 = smul.addr %s120, 2
      %s122 = smul.addr %s121, 8
      %s123 = scalar_lea.vmem %s1, %s122
      %s124 = smul.u32 77, %s12
      %v125 = vld [vmem:[%s116] sm:$0xff]
      %v126 = vld [vmem:[%s116 + $0x8] sm:$0xff]
      %v127 = vld [vmem:[%s116 + $0x10] sm:$0xff]
      %v128 = vld [vmem:[%s116 + $0x18] sm:$0xff]
      %v129 = vld [vmem:[%s116 + $0x20] sm:$0xff]
      %v130 = vld [vmem:[%s116 + $0x28] sm:$0xff]
      %v131 = vld [vmem:[%s116 + $0x30] sm:$0xff]
      %v132 = vld [vmem:[%s116 + $0x38] sm:$0xff]
      %v133 = vld [vmem:[%s116 + $0x40] sm:$0xff]
      %v134 = vld [vmem:[%s116 + $0x48] sm:$0xff]
      %v135 = vld [vmem:[%s116 + $0x50] sm:$0xff]
      %v136 = vld [vmem:[%s116 + $0x58] sm:$0xff]
      %v137 = vld [vmem:[%s116 + $0x60] sm:$0xff]
      %v138 = vld [vmem:[%s116 + $0x68] sm:$0xff]
      %v139 = vld [vmem:[%s116 + $0x70] sm:$0xff]
      %v140 = vld [vmem:[%s116 + $0x78] sm:$0xff]
      %v141 = vld [vmem:[%s116 + $0x80] sm:$0xff]
      %v142 = vld [vmem:[%s116 + $0x88] sm:$0xff]
      %v143 = vld [vmem:[%s116 + $0x90] sm:$0xff]
      %v144 = vld [vmem:[%s116 + $0x98] sm:$0xff]
      %v145 = vld [vmem:[%s116 + $0xa0] sm:$0xff]
      %v146 = vld [vmem:[%s116 + $0xa8] sm:$0xff]
      %v147 = vld [vmem:[%s116 + $0xb0] sm:$0xff]
      %v148 = vld [vmem:[%s116 + $0xb8] sm:$0xff]
      %v149 = vld [vmem:[%s116 + $0xc0] sm:$0xff]
      %v150 = vld [vmem:[%s116 + $0xc8] sm:$0xff]
      %v151 = vld [vmem:[%s116 + $0xd0] sm:$0xff]
      %v152 = vld [vmem:[%s116 + $0xd8] sm:$0xff]
      %v153 = vld [vmem:[%s116 + $0xe0] sm:$0xff]
      %v154 = vld [vmem:[%s116 + $0xe8] sm:$0xff]
      %v155 = vld [vmem:[%s116 + $0xf0] sm:$0xff]
      %v156 = vld [vmem:[%s116 + $0xf8] sm:$0xff]
      %v157 = vld [vmem:[%s116 + $0x100] sm:$0xff]
      %v158 = vld [vmem:[%s116 + $0x108] sm:$0xff]
      %v159 = vld [vmem:[%s116 + $0x110] sm:$0xff]
      %v160 = vld [vmem:[%s116 + $0x118] sm:$0xff]
      %v161 = vld [vmem:[%s116 + $0x120] sm:$0xff]
      %v162 = vld [vmem:[%s116 + $0x128] sm:$0xff]
      %v163 = vld [vmem:[%s116 + $0x130] sm:$0xff]
      %v164 = vld [vmem:[%s116 + $0x138] sm:$0xff]
      %v165 = vld [vmem:[%s116 + $0x140] sm:$0xff]
      %v166 = vld [vmem:[%s116 + $0x148] sm:$0xff]
      %v167 = vld [vmem:[%s116 + $0x150] sm:$0xff]
      %v168 = vld [vmem:[%s116 + $0x158] sm:$0xff]
      %v169 = vld [vmem:[%s116 + $0x160] sm:$0xff]
      %v170 = vld [vmem:[%s116 + $0x168] sm:$0xff]
      %v171 = vld [vmem:[%s116 + $0x170] sm:$0xff]
      %v172 = vld [vmem:[%s116 + $0x178] sm:$0xff]
      %v173 = vld [vmem:[%s116 + $0x180] sm:$0xff]
      %v174 = vld [vmem:[%s116 + $0x188] sm:$0xff]
      %v175 = vld [vmem:[%s116 + $0x190] sm:$0xff]
      %v176 = vld [vmem:[%s116 + $0x198] sm:$0xff]
      %v177 = vld [vmem:[%s116 + $0x1a0] sm:$0xff]
      %v178 = vld [vmem:[%s116 + $0x1a8] sm:$0xff]
      %v179 = vld [vmem:[%s116 + $0x1b0] sm:$0xff]
      %v180 = vld [vmem:[%s116 + $0x1b8] sm:$0xff]
      %v181 = vld [vmem:[%s116 + $0x1c0] sm:$0xff]
      %v182 = vld [vmem:[%s116 + $0x1c8] sm:$0xff]
      %v183 = vld [vmem:[%s116 + $0x1d0] sm:$0xff]
      %v184 = vld [vmem:[%s116 + $0x1d8] sm:$0xff]
      %v185 = vld [vmem:[%s116 + $0x1e0] sm:$0xff]
      %v186 = vld [vmem:[%s116 + $0x1e8] sm:$0xff]
      %v187 = vld [vmem:[%s116 + $0x1f0] sm:$0xff]
      %v188 = vld [vmem:[%s116 + $0x1f8] sm:$0xff]
      %v189 = vld [vmem:[%s116 + $0x200] sm:$0xff]
      %v190 = vld [vmem:[%s116 + $0x208] sm:$0xff]
      %v191 = vld [vmem:[%s116 + $0x210] sm:$0xff]
      %v192 = vld [vmem:[%s116 + $0x218] sm:$0xff]
      %v193 = vld [vmem:[%s116 + $0x220] sm:$0xff]
      %v194 = vld [vmem:[%s116 + $0x228] sm:$0xff]
      %v195 = vld [vmem:[%s116 + $0x230] sm:$0xff]
      %v196 = vld [vmem:[%s116 + $0x238] sm:$0xff]
      %v197 = vld [vmem:[%s116 + $0x240] sm:$0xff]
      %v198 = vld [vmem:[%s116 + $0x248] sm:$0xff]
      %v199 = vld [vmem:[%s116 + $0x250] sm:$0xff]
      %v200 = vld [vmem:[%s116 + $0x258] sm:$0xff]
      %v201 = vld [vmem:[%s116 + $0x260] sm:$0xff]
      %v202 = vld [vmem:[%s116 + $0x268] sm:$0xff]
      %v203 = vld [vmem:[%s116 + $0x270] sm:$0xff]
      %v204 = vld [vmem:[%s116 + $0x278] sm:$0xff]
      %v205 = vld [vmem:[%s116 + $0x280] sm:$0xff]
      %v206 = vld [vmem:[%s116 + $0x288] sm:$0xff]
      %v207 = vld [vmem:[%s116 + $0x290] sm:$0xff]
      %v208 = vld [vmem:[%s116 + $0x298] sm:$0xff]
      %v209 = vld [vmem:[%s116 + $0x2a0] sm:$0xff]
      %v210 = vld [vmem:[%s116 + $0x2a8] sm:$0xff]
      %v211 = vld [vmem:[%s116 + $0x2b0] sm:$0xff]
      %v212 = vld [vmem:[%s116 + $0x2b8] sm:$0xff]
      %v213 = vld [vmem:[%s116 + $0x2c0] sm:$0xff]
      %v214 = vld [vmem:[%s116 + $0x2c8] sm:$0xff]
      %v215 = vld [vmem:[%s116 + $0x2d0] sm:$0xff]
      %v216 = vld [vmem:[%s116 + $0x2d8] sm:$0xff]
      %v217 = vld [vmem:[%s116 + $0x2e0] sm:$0xff]
      %v218 = vld [vmem:[%s116 + $0x2e8] sm:$0xff]
      %v219 = vld [vmem:[%s116 + $0x2f0] sm:$0xff]
      %v220 = vld [vmem:[%s116 + $0x2f8] sm:$0xff]
      %v221 = vld [vmem:[%s116 + $0x300] sm:$0xff]
      %v222 = vld [vmem:[%s116 + $0x308] sm:$0xff]
      %v223 = vld [vmem:[%s116 + $0x310] sm:$0xff]
      %v224 = vld [vmem:[%s116 + $0x318] sm:$0xff]
      %v225 = vld [vmem:[%s116 + $0x320] sm:$0xff]
      %v226 = vld [vmem:[%s116 + $0x328] sm:$0xff]
      %v227 = vld [vmem:[%s116 + $0x330] sm:$0xff]
      %v228 = vld [vmem:[%s116 + $0x338] sm:$0xff]
      %v229 = vld [vmem:[%s116 + $0x340] sm:$0xff]
      %v230 = vld [vmem:[%s116 + $0x348] sm:$0xff]
      %v231 = vld [vmem:[%s116 + $0x350] sm:$0xff]
      %v232 = vld [vmem:[%s116 + $0x358] sm:$0xff]
      %v233 = vld [vmem:[%s116 + $0x360] sm:$0xff]
      %v234 = vld [vmem:[%s116 + $0x368] sm:$0xff]
      %v235 = vld [vmem:[%s116 + $0x370] sm:$0xff]
      %v236 = vld [vmem:[%s116 + $0x378] sm:$0xff]
      %v237 = vld [vmem:[%s116 + $0x380] sm:$0xff]
      %v238 = vld [vmem:[%s116 + $0x388] sm:$0xff]
      %v239 = vld [vmem:[%s116 + $0x390] sm:$0xff]
      %v240 = vld [vmem:[%s116 + $0x398] sm:$0xff]
      %v241 = vld [vmem:[%s116 + $0x3a0] sm:$0xff]
      %v242 = vld [vmem:[%s116 + $0x3a8] sm:$0xff]
      %v243 = vld [vmem:[%s116 + $0x3b0] sm:$0xff]
      %v244 = vld [vmem:[%s116 + $0x3b8] sm:$0xff]
      %v245 = vld [vmem:[%s116 + $0x3c0] sm:$0xff]
      %v246 = vld [vmem:[%s116 + $0x3c8] sm:$0xff]
      %v247 = vld [vmem:[%s116 + $0x3d0] sm:$0xff]
      %v248 = vld [vmem:[%s116 + $0x3d8] sm:$0xff]
      %v249 = vld [vmem:[%s116 + $0x3e0] sm:$0xff]
      %v250 = vld [vmem:[%s116 + $0x3e8] sm:$0xff]
      %v251 = vld [vmem:[%s116 + $0x3f0] sm:$0xff]
      %v252 = vld [vmem:[%s116 + $0x3f8] sm:$0xff]
      %v253 = vld [vmem:[%s116 + $0x400] sm:$0xff]
      %v254 = vld [vmem:[%s116 + $0x408] sm:$0xff]
      %v255 = vld [vmem:[%s116 + $0x410] sm:$0xff]
      %v256 = vld [vmem:[%s116 + $0x418] sm:$0xff]
      %v257 = vld [vmem:[%s116 + $0x420] sm:$0xff]
      %v258 = vld [vmem:[%s116 + $0x428] sm:$0xff]
      %v259 = vld [vmem:[%s116 + $0x430] sm:$0xff]
      %v260 = vld [vmem:[%s116 + $0x438] sm:$0xff]
      %v261 = vld [vmem:[%s116 + $0x440] sm:$0xff]
      %v262 = vld [vmem:[%s116 + $0x448] sm:$0xff]
      %v263 = vld [vmem:[%s116 + $0x450] sm:$0xff]
      %v264 = vld [vmem:[%s116 + $0x458] sm:$0xff]
      %v265 = vld [vmem:[%s116 + $0x460] sm:$0xff]
      %v266 = vld [vmem:[%s116 + $0x468] sm:$0xff]
      %v267 = vld [vmem:[%s116 + $0x470] sm:$0xff]
      %v268 = vld [vmem:[%s116 + $0x478] sm:$0xff]
      %v269 = vld [vmem:[%s116 + $0x480] sm:$0xff]
      %v270 = vld [vmem:[%s116 + $0x488] sm:$0xff]
      %v271 = vld [vmem:[%s116 + $0x490] sm:$0xff]
      %v272 = vld [vmem:[%s116 + $0x498] sm:$0xff]
      %v273 = vld [vmem:[%s116 + $0x4a0] sm:$0xff]
      %v274 = vld [vmem:[%s116 + $0x4a8] sm:$0xff]
      %v275 = vld [vmem:[%s116 + $0x4b0] sm:$0xff]
      %v276 = vld [vmem:[%s116 + $0x4b8] sm:$0xff]
      %v277 = vld [vmem:[%s116 + $0x4c0] sm:$0xff]
      %v278 = vld [vmem:[%s116 + $0x4c8] sm:$0xff]
      %v279 = vmax.f32 %v125, 0.0
      %v280 = vmax.f32 %v126, 0.0
      %v281 = vmax.f32 %v127, 0.0
      %v282 = vmax.f32 %v128, 0.0
      %v283 = vmax.f32 %v129, 0.0
      %v284 = vmax.f32 %v130, 0.0
      %v285 = vmax.f32 %v131, 0.0
      %v286 = vmax.f32 %v132, 0.0
      %v287 = vmax.f32 %v133, 0.0
      %v288 = vmax.f32 %v134, 0.0
      %v289 = vmax.f32 %v135, 0.0
      %v290 = vmax.f32 %v136, 0.0
      %v291 = vmax.f32 %v137, 0.0
      %v292 = vmax.f32 %v138, 0.0
      %v293 = vmax.f32 %v139, 0.0
      %v294 = vmax.f32 %v140, 0.0
      %v295 = vmax.f32 %v141, 0.0
      %v296 = vmax.f32 %v142, 0.0
      %v297 = vmax.f32 %v143, 0.0
      %v298 = vmax.f32 %v144, 0.0
      %v299 = vmax.f32 %v145, 0.0
      %v300 = vmax.f32 %v146, 0.0
      %v301 = vmax.f32 %v147, 0.0
      %v302 = vmax.f32 %v148, 0.0
      %v303 = vmax.f32 %v149, 0.0
      %v304 = vmax.f32 %v150, 0.0
      %v305 = vmax.f32 %v151, 0.0
      %v306 = vmax.f32 %v152, 0.0
      %v307 = vmax.f32 %v153, 0.0
      %v308 = vmax.f32 %v154, 0.0
      %v309 = vmax.f32 %v155, 0.0
      %v310 = vmax.f32 %v156, 0.0
      %v311 = vmax.f32 %v157, 0.0
      %v312 = vmax.f32 %v158, 0.0
      %v313 = vmax.f32 %v159, 0.0
      %v314 = vmax.f32 %v160, 0.0
      %v315 = vmax.f32 %v161, 0.0
      %v316 = vmax.f32 %v162, 0.0
      %v317 = vmax.f32 %v163, 0.0
      %v318 = vmax.f32 %v164, 0.0
      %v319 = vmax.f32 %v165, 0.0
      %v320 = vmax.f32 %v166, 0.0
      %v321 = vmax.f32 %v167, 0.0
      %v322 = vmax.f32 %v168, 0.0
      %v323 = vmax.f32 %v169, 0.0
      %v324 = vmax.f32 %v170, 0.0
      %v325 = vmax.f32 %v171, 0.0
      %v326 = vmax.f32 %v172, 0.0
      %v327 = vmax.f32 %v173, 0.0
      %v328 = vmax.f32 %v174, 0.0
      %v329 = vmax.f32 %v175, 0.0
      %v330 = vmax.f32 %v176, 0.0
      %v331 = vmax.f32 %v177, 0.0
      %v332 = vmax.f32 %v178, 0.0
      %v333 = vmax.f32 %v179, 0.0
      %v334 = vmax.f32 %v180, 0.0
      %v335 = vmax.f32 %v181, 0.0
      %v336 = vmax.f32 %v182, 0.0
      %v337 = vmax.f32 %v183, 0.0
      %v338 = vmax.f32 %v184, 0.0
      %v339 = vmax.f32 %v185, 0.0
      %v340 = vmax.f32 %v186, 0.0
      %v341 = vmax.f32 %v187, 0.0
      %v342 = vmax.f32 %v188, 0.0
      %v343 = vmax.f32 %v189, 0.0
      %v344 = vmax.f32 %v190, 0.0
      %v345 = vmax.f32 %v191, 0.0
      %v346 = vmax.f32 %v192, 0.0
      %v347 = vmax.f32 %v193, 0.0
      %v348 = vmax.f32 %v194, 0.0
      %v349 = vmax.f32 %v195, 0.0
      %v350 = vmax.f32 %v196, 0.0
      %v351 = vmax.f32 %v197, 0.0
      %v352 = vmax.f32 %v198, 0.0
      %v353 = vmax.f32 %v199, 0.0
      %v354 = vmax.f32 %v200, 0.0
      %v355 = vmax.f32 %v201, 0.0
      %v356 = vmax.f32 %v202, 0.0
      %v357 = vmax.f32 %v203, 0.0
      %v358 = vmax.f32 %v204, 0.0
      %v359 = vmax.f32 %v205, 0.0
      %v360 = vmax.f32 %v206, 0.0
      %v361 = vmax.f32 %v207, 0.0
      %v362 = vmax.f32 %v208, 0.0
      %v363 = vmax.f32 %v209, 0.0
      %v364 = vmax.f32 %v210, 0.0
      %v365 = vmax.f32 %v211, 0.0
      %v366 = vmax.f32 %v212, 0.0
      %v367 = vmax.f32 %v213, 0.0
      %v368 = vmax.f32 %v214, 0.0
      %v369 = vmax.f32 %v215, 0.0
      %v370 = vmax.f32 %v216, 0.0
      %v371 = vmax.f32 %v217, 0.0
      %v372 = vmax.f32 %v218, 0.0
      %v373 = vmax.f32 %v219, 0.0
      %v374 = vmax.f32 %v220, 0.0
      %v375 = vmax.f32 %v221, 0.0
      %v376 = vmax.f32 %v222, 0.0
      %v377 = vmax.f32 %v223, 0.0
      %v378 = vmax.f32 %v224, 0.0
      %v379 = vmax.f32 %v225, 0.0
      %v380 = vmax.f32 %v226, 0.0
      %v381 = vmax.f32 %v227, 0.0
      %v382 = vmax.f32 %v228, 0.0
      %v383 = vmax.f32 %v229, 0.0
      %v384 = vmax.f32 %v230, 0.0
      %v385 = vmax.f32 %v231, 0.0
      %v386 = vmax.f32 %v232, 0.0
      %v387 = vmax.f32 %v233, 0.0
      %v388 = vmax.f32 %v234, 0.0
      %v389 = vmax.f32 %v235, 0.0
      %v390 = vmax.f32 %v236, 0.0
      %v391 = vmax.f32 %v237, 0.0
      %v392 = vmax.f32 %v238, 0.0
      %v393 = vmax.f32 %v239, 0.0
      %v394 = vmax.f32 %v240, 0.0
      %v395 = vmax.f32 %v241, 0.0
      %v396 = vmax.f32 %v242, 0.0
      %v397 = vmax.f32 %v243, 0.0
      %v398 = vmax.f32 %v244, 0.0
      %v399 = vmax.f32 %v245, 0.0
      %v400 = vmax.f32 %v246, 0.0
      %v401 = vmax.f32 %v247, 0.0
      %v402 = vmax.f32 %v248, 0.0
      %v403 = vmax.f32 %v249, 0.0
      %v404 = vmax.f32 %v250, 0.0
      %v405 = vmax.f32 %v251, 0.0
      %v406 = vmax.f32 %v252, 0.0
      %v407 = vmax.f32 %v253, 0.0
      %v408 = vmax.f32 %v254, 0.0
      %v409 = vmax.f32 %v255, 0.0
      %v410 = vmax.f32 %v256, 0.0
      %v411 = vmax.f32 %v257, 0.0
      %v412 = vmax.f32 %v258, 0.0
      %v413 = vmax.f32 %v259, 0.0
      %v414 = vmax.f32 %v260, 0.0
      %v415 = vmax.f32 %v261, 0.0
      %v416 = vmax.f32 %v262, 0.0
      %v417 = vmax.f32 %v263, 0.0
      %v418 = vmax.f32 %v264, 0.0
      %v419 = vmax.f32 %v265, 0.0
      %v420 = vmax.f32 %v266, 0.0
      %v421 = vmax.f32 %v267, 0.0
      %v422 = vmax.f32 %v268, 0.0
      %v423 = vmax.f32 %v269, 0.0
      %v424 = vmax.f32 %v270, 0.0
      %v425 = vmax.f32 %v271, 0.0
      %v426 = vmax.f32 %v272, 0.0
      %v427 = vmax.f32 %v273, 0.0
      %v428 = vmax.f32 %v274, 0.0
      %v429 = vmax.f32 %v275, 0.0
      %v430 = vmax.f32 %v276, 0.0
      %v431 = vmax.f32 %v277, 0.0
      %v432 = vmax.f32 %v278, 0.0
      %433 = vst [vmem:[%s123] sm:$0xff] %v279
      %vm434 = vcmask 556032
      %435 = vst.msk [vmem:[%s123 + $0x8] sm:$0xff] %vm434, %v280
      %436 = vst [vmem:[%s123 + $0x10] sm:$0xff] %v281
      %437 = vst.msk [vmem:[%s123 + $0x18] sm:$0xff] %vm434, %v282
      %438 = vst [vmem:[%s123 + $0x20] sm:$0xff] %v283
      %439 = vst.msk [vmem:[%s123 + $0x28] sm:$0xff] %vm434, %v284
      %440 = vst [vmem:[%s123 + $0x30] sm:$0xff] %v285
      %441 = vst.msk [vmem:[%s123 + $0x38] sm:$0xff] %vm434, %v286
      %442 = vst [vmem:[%s123 + $0x40] sm:$0xff] %v287
      %443 = vst.msk [vmem:[%s123 + $0x48] sm:$0xff] %vm434, %v288
      %444 = vst [vmem:[%s123 + $0x50] sm:$0xff] %v289
      %445 = vst.msk [vmem:[%s123 + $0x58] sm:$0xff] %vm434, %v290
      %446 = vst [vmem:[%s123 + $0x60] sm:$0xff] %v291
      %447 = vst.msk [vmem:[%s123 + $0x68] sm:$0xff] %vm434, %v292
      %448 = vst [vmem:[%s123 + $0x70] sm:$0xff] %v293
      %449 = vst.msk [vmem:[%s123 + $0x78] sm:$0xff] %vm434, %v294
      %450 = vst [vmem:[%s123 + $0x80] sm:$0xff] %v295
      %451 = vst.msk [vmem:[%s123 + $0x88] sm:$0xff] %vm434, %v296
      %452 = vst [vmem:[%s123 + $0x90] sm:$0xff] %v297
      %453 = vst.msk [vmem:[%s123 + $0x98] sm:$0xff] %vm434, %v298
      %454 = vst [vmem:[%s123 + $0xa0] sm:$0xff] %v299
      %455 = vst.msk [vmem:[%s123 + $0xa8] sm:$0xff] %vm434, %v300
      %456 = vst [vmem:[%s123 + $0xb0] sm:$0xff] %v301
      %457 = vst.msk [vmem:[%s123 + $0xb8] sm:$0xff] %vm434, %v302
      %458 = vst [vmem:[%s123 + $0xc0] sm:$0xff] %v303
      %459 = vst.msk [vmem:[%s123 + $0xc8] sm:$0xff] %vm434, %v304
      %460 = vst [vmem:[%s123 + $0xd0] sm:$0xff] %v305
      %461 = vst.msk [vmem:[%s123 + $0xd8] sm:$0xff] %vm434, %v306
      %462 = vst [vmem:[%s123 + $0xe0] sm:$0xff] %v307
      %463 = vst.msk [vmem:[%s123 + $0xe8] sm:$0xff] %vm434, %v308
      %464 = vst [vmem:[%s123 + $0xf0] sm:$0xff] %v309
      %465 = vst.msk [vmem:[%s123 + $0xf8] sm:$0xff] %vm434, %v310
      %466 = vst [vmem:[%s123 + $0x100] sm:$0xff] %v311
      %467 = vst.msk [vmem:[%s123 + $0x108] sm:$0xff] %vm434, %v312
      %468 = vst [vmem:[%s123 + $0x110] sm:$0xff] %v313
      %469 = vst.msk [vmem:[%s123 + $0x118] sm:$0xff] %vm434, %v314
      %470 = vst [vmem:[%s123 + $0x120] sm:$0xff] %v315
      %471 = vst.msk [vmem:[%s123 + $0x128] sm:$0xff] %vm434, %v316
      %472 = vst [vmem:[%s123 + $0x130] sm:$0xff] %v317
      %473 = vst.msk [vmem:[%s123 + $0x138] sm:$0xff] %vm434, %v318
      %474 = vst [vmem:[%s123 + $0x140] sm:$0xff] %v319
      %475 = vst.msk [vmem:[%s123 + $0x148] sm:$0xff] %vm434, %v320
      %476 = vst [vmem:[%s123 + $0x150] sm:$0xff] %v321
      %477 = vst.msk [vmem:[%s123 + $0x158] sm:$0xff] %vm434, %v322
      %478 = vst [vmem:[%s123 + $0x160] sm:$0xff] %v323
      %479 = vst.msk [vmem:[%s123 + $0x168] sm:$0xff] %vm434, %v324
      %480 = vst [vmem:[%s123 + $0x170] sm:$0xff] %v325
      %481 = vst.msk [vmem:[%s123 + $0x178] sm:$0xff] %vm434, %v326
      %482 = vst [vmem:[%s123 + $0x180] sm:$0xff] %v327
      %483 = vst.msk [vmem:[%s123 + $0x188] sm:$0xff] %vm434, %v328
      %484 = vst [vmem:[%s123 + $0x190] sm:$0xff] %v329
      %485 = vst.msk [vmem:[%s123 + $0x198] sm:$0xff] %vm434, %v330
      %486 = vst [vmem:[%s123 + $0x1a0] sm:$0xff] %v331
      %487 = vst.msk [vmem:[%s123 + $0x1a8] sm:$0xff] %vm434, %v332
      %488 = vst [vmem:[%s123 + $0x1b0] sm:$0xff] %v333
      %489 = vst.msk [vmem:[%s123 + $0x1b8] sm:$0xff] %vm434, %v334
      %490 = vst [vmem:[%s123 + $0x1c0] sm:$0xff] %v335
      %491 = vst.msk [vmem:[%s123 + $0x1c8] sm:$0xff] %vm434, %v336
      %492 = vst [vmem:[%s123 + $0x1d0] sm:$0xff] %v337
      %493 = vst.msk [vmem:[%s123 + $0x1d8] sm:$0xff] %vm434, %v338
      %494 = vst [vmem:[%s123 + $0x1e0] sm:$0xff] %v339
      %495 = vst.msk [vmem:[%s123 + $0x1e8] sm:$0xff] %vm434, %v340
      %496 = vst [vmem:[%s123 + $0x1f0] sm:$0xff] %v341
      %497 = vst.msk [vmem:[%s123 + $0x1f8] sm:$0xff] %vm434, %v342
      %498 = vst [vmem:[%s123 + $0x200] sm:$0xff] %v343
      %499 = vst.msk [vmem:[%s123 + $0x208] sm:$0xff] %vm434, %v344
      %500 = vst [vmem:[%s123 + $0x210] sm:$0xff] %v345
      %501 = vst.msk [vmem:[%s123 + $0x218] sm:$0xff] %vm434, %v346
      %502 = vst [vmem:[%s123 + $0x220] sm:$0xff] %v347
      %503 = vst.msk [vmem:[%s123 + $0x228] sm:$0xff] %vm434, %v348
      %504 = vst [vmem:[%s123 + $0x230] sm:$0xff] %v349
      %505 = vst.msk [vmem:[%s123 + $0x238] sm:$0xff] %vm434, %v350
      %506 = vst [vmem:[%s123 + $0x240] sm:$0xff] %v351
      %507 = vst.msk [vmem:[%s123 + $0x248] sm:$0xff] %vm434, %v352
      %508 = vst [vmem:[%s123 + $0x250] sm:$0xff] %v353
      %509 = vst.msk [vmem:[%s123 + $0x258] sm:$0xff] %vm434, %v354
      %510 = vst [vmem:[%s123 + $0x260] sm:$0xff] %v355
      %511 = vst.msk [vmem:[%s123 + $0x268] sm:$0xff] %vm434, %v356
      %512 = vst [vmem:[%s123 + $0x270] sm:$0xff] %v357
      %513 = vst.msk [vmem:[%s123 + $0x278] sm:$0xff] %vm434, %v358
      %514 = vst [vmem:[%s123 + $0x280] sm:$0xff] %v359
      %515 = vst.msk [vmem:[%s123 + $0x288] sm:$0xff] %vm434, %v360
      %516 = vst [vmem:[%s123 + $0x290] sm:$0xff] %v361
      %517 = vst.msk [vmem:[%s123 + $0x298] sm:$0xff] %vm434, %v362
      %518 = vst [vmem:[%s123 + $0x2a0] sm:$0xff] %v363
      %519 = vst.msk [vmem:[%s123 + $0x2a8] sm:$0xff] %vm434, %v364
      %520 = vst [vmem:[%s123 + $0x2b0] sm:$0xff] %v365
      %521 = vst.msk [vmem:[%s123 + $0x2b8] sm:$0xff] %vm434, %v366
      %522 = vst [vmem:[%s123 + $0x2c0] sm:$0xff] %v367
      %523 = vst.msk [vmem:[%s123 + $0x2c8] sm:$0xff] %vm434, %v368
      %524 = vst [vmem:[%s123 + $0x2d0] sm:$0xff] %v369
      %525 = vst.msk [vmem:[%s123 + $0x2d8] sm:$0xff] %vm434, %v370
      %526 = vst [vmem:[%s123 + $0x2e0] sm:$0xff] %v371
      %527 = vst.msk [vmem:[%s123 + $0x2e8] sm:$0xff] %vm434, %v372
      %528 = vst [vmem:[%s123 + $0x2f0] sm:$0xff] %v373
      %529 = vst.msk [vmem:[%s123 + $0x2f8] sm:$0xff] %vm434, %v374
      %530 = vst [vmem:[%s123 + $0x300] sm:$0xff] %v375
      %531 = vst.msk [vmem:[%s123 + $0x308] sm:$0xff] %vm434, %v376
      %532 = vst [vmem:[%s123 + $0x310] sm:$0xff] %v377
      %533 = vst.msk [vmem:[%s123 + $0x318] sm:$0xff] %vm434, %v378
      %534 = vst [vmem:[%s123 + $0x320] sm:$0xff] %v379
      %535 = vst.msk [vmem:[%s123 + $0x328] sm:$0xff] %vm434, %v380
      %536 = vst [vmem:[%s123 + $0x330] sm:$0xff] %v381
      %537 = vst.msk [vmem:[%s123 + $0x338] sm:$0xff] %vm434, %v382
      %538 = vst [vmem:[%s123 + $0x340] sm:$0xff] %v383
      %539 = vst.msk [vmem:[%s123 + $0x348] sm:$0xff] %vm434, %v384
      %540 = vst [vmem:[%s123 + $0x350] sm:$0xff] %v385
      %541 = vst.msk [vmem:[%s123 + $0x358] sm:$0xff] %vm434, %v386
      %542 = vst [vmem:[%s123 + $0x360] sm:$0xff] %v387
      %543 = vst.msk [vmem:[%s123 + $0x368] sm:$0xff] %vm434, %v388
      %544 = vst [vmem:[%s123 + $0x370] sm:$0xff] %v389
      %545 = vst.msk [vmem:[%s123 + $0x378] sm:$0xff] %vm434, %v390
      %546 = vst [vmem:[%s123 + $0x380] sm:$0xff] %v391
      %547 = vst.msk [vmem:[%s123 + $0x388] sm:$0xff] %vm434, %v392
      %548 = vst [vmem:[%s123 + $0x390] sm:$0xff] %v393
      %549 = vst.msk [vmem:[%s123 + $0x398] sm:$0xff] %vm434, %v394
      %550 = vst [vmem:[%s123 + $0x3a0] sm:$0xff] %v395
      %551 = vst.msk [vmem:[%s123 + $0x3a8] sm:$0xff] %vm434, %v396
      %552 = vst [vmem:[%s123 + $0x3b0] sm:$0xff] %v397
      %553 = vst.msk [vmem:[%s123 + $0x3b8] sm:$0xff] %vm434, %v398
      %554 = vst [vmem:[%s123 + $0x3c0] sm:$0xff] %v399
      %555 = vst.msk [vmem:[%s123 + $0x3c8] sm:$0xff] %vm434, %v400
      %556 = vst [vmem:[%s123 + $0x3d0] sm:$0xff] %v401
      %557 = vst.msk [vmem:[%s123 + $0x3d8] sm:$0xff] %vm434, %v402
      %558 = vst [vmem:[%s123 + $0x3e0] sm:$0xff] %v403
      %559 = vst.msk [vmem:[%s123 + $0x3e8] sm:$0xff] %vm434, %v404
      %560 = vst [vmem:[%s123 + $0x3f0] sm:$0xff] %v405
      %561 = vst.msk [vmem:[%s123 + $0x3f8] sm:$0xff] %vm434, %v406
      %562 = vst [vmem:[%s123 + $0x400] sm:$0xff] %v407
      %563 = vst.msk [vmem:[%s123 + $0x408] sm:$0xff] %vm434, %v408
      %564 = vst [vmem:[%s123 + $0x410] sm:$0xff] %v409
      %565 = vst.msk [vmem:[%s123 + $0x418] sm:$0xff] %vm434, %v410
      %566 = vst [vmem:[%s123 + $0x420] sm:$0xff] %v411
      %567 = vst.msk [vmem:[%s123 + $0x428] sm:$0xff] %vm434, %v412
      %568 = vst [vmem:[%s123 + $0x430] sm:$0xff] %v413
      %569 = vst.msk [vmem:[%s123 + $0x438] sm:$0xff] %vm434, %v414
      %570 = vst [vmem:[%s123 + $0x440] sm:$0xff] %v415
      %571 = vst.msk [vmem:[%s123 + $0x448] sm:$0xff] %vm434, %v416
      %572 = vst [vmem:[%s123 + $0x450] sm:$0xff] %v417
      %573 = vst.msk [vmem:[%s123 + $0x458] sm:$0xff] %vm434, %v418
      %574 = vst [vmem:[%s123 + $0x460] sm:$0xff] %v419
      %575 = vst.msk [vmem:[%s123 + $0x468] sm:$0xff] %vm434, %v420
      %576 = vst [vmem:[%s123 + $0x470] sm:$0xff] %v421
      %577 = vst.msk [vmem:[%s123 + $0x478] sm:$0xff] %vm434, %v422
      %578 = vst [vmem:[%s123 + $0x480] sm:$0xff] %v423
      %579 = vst.msk [vmem:[%s123 + $0x488] sm:$0xff] %vm434, %v424
      %580 = vst [vmem:[%s123 + $0x490] sm:$0xff] %v425
      %581 = vst.msk [vmem:[%s123 + $0x498] sm:$0xff] %vm434, %v426
      %582 = vst [vmem:[%s123 + $0x4a0] sm:$0xff] %v427
      %583 = vst.msk [vmem:[%s123 + $0x4a8] sm:$0xff] %vm434, %v428
      %584 = vst [vmem:[%s123 + $0x4b0] sm:$0xff] %v429
      %585 = vst.msk [vmem:[%s123 + $0x4b8] sm:$0xff] %vm434, %v430
      %586 = vst [vmem:[%s123 + $0x4c0] sm:$0xff] %v431
      %587 = vst.msk [vmem:[%s123 + $0x4c8] sm:$0xff] %vm434, %v432
      %s588 = smul.u32 77, %s12
      %p589 = scmp.lt.s32.totalorder %s588, 153
      %s590 = scalar_select %p589, %s588, 153
      %s591 = smul.addr %s590, 2
      %s592 = smul.addr %s591, 8
      %s593 = scalar_lea.vmem %s1, %s592
      // Predicated region
      $region25: #{relu_pallas.1} parent=23 // pred_check
        %p594 = pneg %p56
      $region26: #{relu_pallas.1} parent=23 // pred_check_branch
        %596 = sbr.rel (%p594) target = $region28
      $region27: #{relu_pallas.1} parent=23 // pred_region
        %s597 = smul.u32 77, %s12
      $region28: #{relu_pallas.1} parent=23 // pred_fallthru
        _
    $region24: #{relu_pallas.1} parent=5 // pred_fallthru
      _
    %p598 = scmp.le.s32.totalorder 2, %s7
    // Predicated region
    $region29: #{relu_pallas.1} parent=5 // pred_check
      %p599 = pneg %p598
    $region30: #{relu_pallas.1} parent=5 // pred_check_branch
      %601 = sbr.rel (%p599) target = $region32
    $region31: #{relu_pallas.1} parent=5 // pred_region
      %s602 = ssub.s32 %s7, 2
      // Predicated region
      $region33: #{relu_pallas.1} parent=31 // pred_check
        %p603 = pneg %p62
      $region34: #{relu_pallas.1} parent=31 // pred_check_branch
        %605 = sbr.rel (%p603) target = $region36
      $region35: #{relu_pallas.1} parent=31 // pred_region
        %s606 = smul.u32 77, %s13
        %p607 = scmp.lt.s32.totalorder %s606, 153
        %s608 = scalar_select %p607, %s606, 153
        %s609 = smul.addr %s608, 2
        %s610 = smul.addr %s609, 8
        %s611 = scalar_lea.vmem %s1, %s610
      $region36: #{relu_pallas.1} parent=31 // pred_fallthru
        _
    $region32: #{relu_pallas.1} parent=5 // pred_fallthru
      _
  $region6: #{relu_pallas.1} parent=0 // loop_footer
    %s11 = sadd.s32 1, %s7
  $region7: #{relu_pallas.1} parent=0 // loop_footer_branch
    %6 = sbr.rel target = $region3
  $region8: #{relu_pallas.1} parent=0 // loop_exit
    _

</llo_original>
